<compile_context>
chip_gen: v5e
topology: v5e:2x2
jax: 0.10.0
libtpu: 0.0.40
codegen_flags: <defaults>
</compile_context>

<pallas_src>
import functools

import jax
import jax.numpy as jnp
from jax.experimental import pallas as pl
from jax.experimental.pallas import tpu as pltpu


def _round_up(x: int, m: int) -> int:
    return ((x + m - 1) // m) * m


def _tuplet_loss_kernel(emb_ref, out_ref, *, batch: int, tile_b: int,
                        ragged: bool):
    # emb_ref: (3, TB, D) VMEM tile of the current batch slice (input dtype)
    # out_ref: (1, 1, 128) f32 VMEM per-tile partial-sum block
    a = emb_ref[0].astype(jnp.float32)  # (TB, D) anchor
    p = emb_ref[1].astype(jnp.float32)  # (TB, D) positive
    n = emb_ref[2].astype(jnp.float32)  # (TB, D) negative

    # Row-wise dots / squared norms, kept 2-D (TB, 1) for clean layouts.
    dot_ap = jnp.sum(a * p, axis=-1, keepdims=True)
    dot_an = jnp.sum(a * n, axis=-1, keepdims=True)
    ss_a = jnp.sum(a * a, axis=-1, keepdims=True)
    ss_p = jnp.sum(p * p, axis=-1, keepdims=True)
    ss_n = jnp.sum(n * n, axis=-1, keepdims=True)

    # torch.cosine_similarity: dot / max(||x||*||y||, eps)
    #   == dot * rsqrt(max(ss_x * ss_y, eps^2))   (sqrt is monotone)
    eps2 = jnp.float32(1e-16)  # (1e-8)^2
    cos_ap = dot_ap * jax.lax.rsqrt(jnp.maximum(ss_a * ss_p, eps2))
    cos_an = dot_an * jax.lax.rsqrt(jnp.maximum(ss_a * ss_n, eps2))

    # log(1 + exp(cos_an - cos_ap)); argument in [-2, 2] so no overflow.
    loss = jnp.log1p(jnp.exp(cos_an - cos_ap))  # (TB, 1)

    if ragged:
        # Mask padded rows of the ragged last tile out of the sum.  Keep this a
        # select (not loss * mask) so NaN/Inf in padded rows cannot propagate.
        row = (pl.program_id(0) * tile_b
               + jax.lax.broadcasted_iota(jnp.int32, loss.shape, 0))
        loss = jnp.where(row < batch, loss, jnp.float32(0.0))

    tile_sum = jnp.sum(loss)  # scalar
    out_ref[...] = jnp.full(out_ref.shape, tile_sum, dtype=jnp.float32)


def two_plus_one_tuplet_loss(embeddings, *, tile_b: int | None = None):
    """embeddings: (3, B, D) array (f32 or bf16). Returns scalar f32 loss."""
    assert embeddings.ndim == 3 and embeddings.shape[0] == 3
    _, B, D = embeddings.shape
    itemsize = jnp.dtype(embeddings.dtype).itemsize
    # Native sublane packing: 8 rows for 32-bit, 16 for 16-bit, 32 for 8-bit.
    sublane = {4: 8, 2: 16, 1: 32}.get(itemsize, 8)

    # VMEM-budget- and D-aware tile: ~8 MiB per (3, tile_b, D) input block.
    bytes_per_row = 3 * D * itemsize
    if tile_b is None:
        target_block_bytes = 8 * 1024 * 1024
        tile_b = (target_block_bytes // bytes_per_row) // sublane * sublane
    tile_b = max(sublane,
                 min(_round_up(tile_b, sublane), _round_up(B, sublane)))

    num_tiles = (B + tile_b - 1) // tile_b
    ragged = (B % tile_b) != 0

    block_bytes = 3 * tile_b * D * itemsize
    # Double-buffered input blocks + output/scratch must fit; 48 MiB is safe on
    # v7x (64 MiB physical) and raises the 16/32 MiB scoped defaults on v5e/v6e.
    vmem_limit = max(48 * 1024 * 1024, int(2.25 * block_bytes) + (2 << 20))

    kernel = functools.partial(_tuplet_loss_kernel, batch=B, tile_b=tile_b,
                               ragged=ragged)

    partials = pl.pallas_call(
        kernel,
        out_shape=jax.ShapeDtypeStruct((num_tiles, 1, 128), jnp.float32),
        grid=(num_tiles,),
        in_specs=[pl.BlockSpec((3, tile_b, D), lambda i: (0, i, 0))],
        out_specs=pl.BlockSpec((1, 1, 128), lambda i: (i, 0, 0)),
        compiler_params=pltpu.CompilerParams(
            dimension_semantics=("parallel",),
            vmem_limit_bytes=vmem_limit),
        cost_estimate=pl.CostEstimate(
            flops=10 * B * D,
            transcendentals=4 * B,
            bytes_accessed=3 * B * D * itemsize + num_tiles * 512),
    )(embeddings)

    # Final reduction over per-tile partial sums + mean in plain JAX.
    return jnp.sum(partials[:, 0, 0]) * (1.0 / B)


def _reference(embeddings):
    # Pure-JAX reference mirroring torch.cosine_similarity + the forward.
    eps = 1e-8
    a, p, n = (embeddings[i].astype(jnp.float32) for i in range(3))

    def cos(x, y):
        dot = jnp.sum(x * y, axis=-1)
        denom = jnp.maximum(
            jnp.linalg.norm(x, axis=-1) * jnp.linalg.norm(y, axis=-1), eps)
        return dot / denom

    return jnp.mean(jnp.log1p(jnp.exp(cos(a, n) - cos(a, p))))


if __name__ == "__main__":
    # Case 1: f32, B divisible by a forced small tile (grid of 4, exercises
    # pipelining + the "parallel" per-tile partial outputs).
    B, D = 32, 64
    emb = jax.random.normal(jax.random.PRNGKey(0), (3, B, D), dtype=jnp.float32)
    loss = two_plus_one_tuplet_loss(emb, tile_b=8)
    jax.block_until_ready(loss)
    ref = _reference(emb)
    assert jnp.allclose(loss, ref, atol=1e-5, rtol=1e-5), (loss, ref)

    # Case 2: ragged batch (B=20, tile=8 -> 3 tiles, last one masked).
    B2 = 20
    emb2 = jax.random.normal(jax.random.PRNGKey(1), (3, B2, D), dtype=jnp.float32)
    loss2 = two_plus_one_tuplet_loss(emb2, tile_b=8)
    jax.block_until_ready(loss2)
    ref2 = _reference(emb2)
    assert jnp.allclose(loss2, ref2, atol=1e-5, rtol=1e-5), (loss2, ref2)

    # Case 3: bf16 input, auto (VMEM-budget) tile -> single block here.
    emb_bf16 = emb.astype(jnp.bfloat16)
    loss3 = two_plus_one_tuplet_loss(emb_bf16)
    jax.block_until_ready(loss3)
    ref3 = _reference(emb_bf16)
    assert jnp.allclose(loss3, ref3, atol=2e-2, rtol=2e-2), (loss3, ref3)

    print("KERNEL_OK")
</pallas_src>

<mosaic_0001>
module attributes {stable_mosaic.version = 11 : i64} {
  func.func @_tuplet_loss_kernel(%arg0: i32, %arg1: memref<3x8x64xf32, #tpu.memory_space<vmem>>, %arg2: memref<1x1x128xf32, #tpu.memory_space<vmem>>) attributes {dimension_semantics = [#tpu.dimension_semantics<parallel>], iteration_bounds = array<i64: 4>, scalar_prefetch = 0 : i64, scratch_operands = 0 : i64, tpu.core_type = #tpu.core_type<tc>, window_params = [{transform_indices = @transform_0, window_bounds = array<i64: 3, 8, 64>}, {transform_indices = @transform_1, window_bounds = array<i64: 1, 1, 128>}]} {
    %c0 = arith.constant 0 : index
    %c0_0 = arith.constant 0 : index
    %c0_1 = arith.constant 0 : index
    %0 = vector.load %arg1[%c0, %c0_0, %c0_1] : memref<3x8x64xf32, #tpu.memory_space<vmem>>, vector<1x8x64xf32>
    %1 = vector.shape_cast %0 : vector<1x8x64xf32> to vector<8x64xf32>
    %c1 = arith.constant 1 : index
    %c0_2 = arith.constant 0 : index
    %c0_3 = arith.constant 0 : index
    %2 = vector.load %arg1[%c1, %c0_2, %c0_3] : memref<3x8x64xf32, #tpu.memory_space<vmem>>, vector<1x8x64xf32>
    %3 = vector.shape_cast %2 : vector<1x8x64xf32> to vector<8x64xf32>
    %c2 = arith.constant 2 : index
    %c0_4 = arith.constant 0 : index
    %c0_5 = arith.constant 0 : index
    %4 = vector.load %arg1[%c2, %c0_4, %c0_5] : memref<3x8x64xf32, #tpu.memory_space<vmem>>, vector<1x8x64xf32>
    %5 = vector.shape_cast %4 : vector<1x8x64xf32> to vector<8x64xf32>
    %6 = arith.mulf %1, %3 : vector<8x64xf32>
    %cst = arith.constant dense<0.000000e+00> : vector<8xf32>
    %7 = vector.multi_reduction <add>, %6, %cst [1] : vector<8x64xf32> to vector<8xf32>
    %8 = vector.shape_cast %7 : vector<8xf32> to vector<8x1xf32>
    %9 = arith.mulf %1, %5 : vector<8x64xf32>
    %cst_6 = arith.constant dense<0.000000e+00> : vector<8xf32>
    %10 = vector.multi_reduction <add>, %9, %cst_6 [1] : vector<8x64xf32> to vector<8xf32>
    %11 = vector.shape_cast %10 : vector<8xf32> to vector<8x1xf32>
    %12 = arith.mulf %1, %1 : vector<8x64xf32>
    %cst_7 = arith.constant dense<0.000000e+00> : vector<8xf32>
    %13 = vector.multi_reduction <add>, %12, %cst_7 [1] : vector<8x64xf32> to vector<8xf32>
    %14 = vector.shape_cast %13 : vector<8xf32> to vector<8x1xf32>
    %15 = arith.mulf %3, %3 : vector<8x64xf32>
    %cst_8 = arith.constant dense<0.000000e+00> : vector<8xf32>
    %16 = vector.multi_reduction <add>, %15, %cst_8 [1] : vector<8x64xf32> to vector<8xf32>
    %17 = vector.shape_cast %16 : vector<8xf32> to vector<8x1xf32>
    %18 = arith.mulf %5, %5 : vector<8x64xf32>
    %cst_9 = arith.constant dense<0.000000e+00> : vector<8xf32>
    %19 = vector.multi_reduction <add>, %18, %cst_9 [1] : vector<8x64xf32> to vector<8xf32>
    %20 = vector.shape_cast %19 : vector<8xf32> to vector<8x1xf32>
    %21 = arith.mulf %14, %17 : vector<8x1xf32>
    %cst_10 = arith.constant 1.000000e-16 : f32
    %22 = vector.broadcast %cst_10 : f32 to vector<8x1xf32>
    %23 = arith.maximumf %21, %22 : vector<8x1xf32>
    %24 = math.rsqrt %23 : vector<8x1xf32>
    %25 = arith.mulf %8, %24 : vector<8x1xf32>
    %26 = arith.mulf %14, %20 : vector<8x1xf32>
    %cst_11 = arith.constant 1.000000e-16 : f32
    %27 = vector.broadcast %cst_11 : f32 to vector<8x1xf32>
    %28 = arith.maximumf %26, %27 : vector<8x1xf32>
    %29 = math.rsqrt %28 : vector<8x1xf32>
    %30 = arith.mulf %11, %29 : vector<8x1xf32>
    %31 = arith.subf %30, %25 : vector<8x1xf32>
    %32 = math.exp %31 : vector<8x1xf32>
    %33 = math.log1p %32 : vector<8x1xf32>
    %34 = vector.shape_cast %33 : vector<8x1xf32> to vector<1x8x1xf32>
    %cst_12 = arith.constant dense<0.000000e+00> : vector<1xf32>
    %35 = vector.multi_reduction <add>, %34, %cst_12 [1, 2] : vector<1x8x1xf32> to vector<1xf32>
    %36 = vector.shape_cast %35 : vector<1xf32> to vector<1x1x1xf32>
    %37 = vector.extract %36[0, 0, 0] : f32 from vector<1x1x1xf32>
    %38 = vector.broadcast %37 : f32 to vector<1x1x128xf32>
    %c0_13 = arith.constant 0 : index
    %c0_14 = arith.constant 0 : index
    %c0_15 = arith.constant 0 : index
    %39 = vector.load %arg2[%c0_13, %c0_14, %c0_15] : memref<1x1x128xf32, #tpu.memory_space<vmem>>, vector<1x1x128xf32>
    tpu.vector_store %arg2[%c0_13, %c0_14, %c0_15], %38 {strides = array<i32>} : memref<1x1x128xf32, #tpu.memory_space<vmem>>, vector<1x1x128xf32>,
    return
  }
  func.func @transform_0(%arg0: i32) -> (i32, i32, i32) {
    %c0_i32 = arith.constant 0 : i32
    %c0_i32_0 = arith.constant 0 : i32
    %c0_i32_1 = arith.constant 0 : i32
    return %c0_i32, %arg0, %c0_i32_0 : i32, i32, i32
  }
  func.func @transform_1(%arg0: i32) -> (i32, i32, i32) {
    %c0_i32 = arith.constant 0 : i32
    %c0_i32_0 = arith.constant 0 : i32
    %c0_i32_1 = arith.constant 0 : i32
    return %arg0, %c0_i32, %c0_i32_0 : i32, i32, i32
  }
}

</mosaic_0001>

<llo_original>
// kernel: tpu_custom_call.1
$region0: #{tpu_custom_call.1}
  #allocation0 [shape = 'u32[]', space=smem, size = 0x4, offset = 0x4, fixed_abs, tag = 'smem constant byte address 0x4 - core index']
  #allocation1 [shape = 'u32[72,128]{1,0:T(1,128)}', space=vmem, size = 0x9000, scoped, tag = 'internal scratch']
  %s0 = inlined_call_operand.hbm [shape: f32[3,32,64], index: 0, kind: input, shape index: {}]
  %s1 = inlined_call_operand.hbm [shape: f32[4,1,128], index: 1, kind: output, shape index: {}]
  %s2 = sld [smem:[#allocation0]]
  $region41: #{tpu_custom_call.1} parent=0
    _
  %s4 = ssub.s32 1, %s2
  %s5 = scalar_select 0, %s4, %s2
  $region1: #{tpu_custom_call.1} parent=0
    #allocation2 [shape = 'u8[24576]{0}', space=vmem, size = 0x6000, scoped, tag = 'input window, operand 0']
    #allocation3 [shape = 's32[2]{0}', space=sflag, size = 0x8, scoped, tag = 'scoped memory for tpu_custom_call.1']
    #allocation4 [shape = 's32[2]{0}', space=sflag, size = 0x8, scoped, tag = 'scoped memory for tpu_custom_call.1']
    #allocation5 [shape = 'u8[1024]{0}', space=vmem, size = 0x400, scoped, tag = 'output window, operand 0']
    %6 = vsyncpa [#allocation3], 0
    %s7 = scalar_lea.sflag [#allocation3], 1
    %8 = vsyncpa %s7, 0
    %9 = vsyncpa [#allocation4], 0
    %s10 = scalar_lea.sflag [#allocation4], 1
    %11 = vsyncpa %s10, 0
    loop: start=0, step=1, limit=6
    $region2: #{tpu_custom_call.1} parent=1 // loop_pre_header
      _
    $region3: #{tpu_custom_call.1} parent=1 // loop_header
      %s13 = sphi 0, %s17
      %p14 = scmp.ge.s32.totalorder %s13, 6
      %s23 = sphi 0, %s25
      %s26 = sphi 0, %s23
      %s27 = sphi 0, %s26
      %s43 = sphi 0, %s27
      %s49 = sphi 0, %s51
      %s52 = sphi 0, %s49
      %s53 = sphi 0, %s52
      %s69 = sphi 0, %s53
    $region4: #{tpu_custom_call.1} parent=1 // loop_header_branch
      %16 = sbr.rel (%p14) target = $region8
    $region5: #{tpu_custom_call.1} parent=1 // loop_body
      %s18 = ssub.s32 %s13, 1
      %s19 = ssub.s32 %s13, 2
      %s20 = sadd.s32 %s13, 1
      %s21 = ssub.s32 %s13, %s20
      %p22 = scmp.eq.s32.totalorder %s21, 0
      %s24 = sadd.s32 %s23, 1
      %s25 = scalar_select %p22, %s23, %s24
      %p28 = pneg %p22
      %p29 = scmp.eq.s32.totalorder %s13, 3
      %p30 = por %p28, %p29
      %p31 = scmp.ne.s32.totalorder %s23, %s26
      %p32 = scmp.eq.s32.totalorder %s13, 0
      %p33 = por %p31, %p32
      %p34 = scmp.ne.s32.totalorder %s23, %s26
      %p35 = scmp.eq.s32.totalorder %s18, 3
      %p36 = por %p34, %p35
      %p37 = scmp.ne.s32.totalorder %s26, %s27
      %p38 = scmp.eq.s32.totalorder %s18, 0
      %p39 = por %p37, %p38
      %p40 = scmp.ne.s32.totalorder %s26, %s27
      %p41 = scmp.eq.s32.totalorder %s19, 3
      %p42 = por %p40, %p41
      %p44 = scmp.ne.s32.totalorder %s27, %s43
      %p45 = scmp.eq.s32.totalorder %s19, 0
      %p46 = por %p44, %p45
      %s47 = ssub.s32 %s13, %s20
      %p48 = scmp.eq.s32.totalorder %s47, 0
      %s50 = sadd.s32 %s49, 1
      %s51 = scalar_select %p48, %s49, %s50
      %p54 = pneg %p48
      %p55 = scmp.eq.s32.totalorder %s13, 3
      %p56 = por %p54, %p55
      %p57 = scmp.ne.s32.totalorder %s49, %s52
      %p58 = scmp.eq.s32.totalorder %s13, 0
      %p59 = por %p57, %p58
      %p60 = scmp.ne.s32.totalorder %s49, %s52
      %p61 = scmp.eq.s32.totalorder %s18, 3
      %p62 = por %p60, %p61
      %p63 = scmp.ne.s32.totalorder %s52, %s53
      %p64 = scmp.eq.s32.totalorder %s18, 0
      %p65 = por %p63, %p64
      %p66 = scmp.ne.s32.totalorder %s52, %s53
      %p67 = scmp.eq.s32.totalorder %s19, 3
      %p68 = por %p66, %p67
      %p70 = scmp.ne.s32.totalorder %s53, %s69
      %p71 = scmp.eq.s32.totalorder %s19, 0
      %p72 = por %p70, %p71
      %p73 = scmp.le.s32.totalorder 1, %s13
      %p74 = scmp.lt.s32.totalorder %s13, 5
      %p75 = pnand %p73, %p74
      %p76 = pneg %p75
      // Predicated region
      $region9: #{tpu_custom_call.1} parent=5 // pred_check
        _
      $region10: #{tpu_custom_call.1} parent=5 // pred_check_branch
        %78 = sbr.rel (%p75) target = $region12
      $region11: #{tpu_custom_call.1} parent=5 // pred_region
        %s79 = ssub.s32 %s13, 1
      $region12: #{tpu_custom_call.1} parent=5 // pred_fallthru
        _
      %p80 = scmp.lt.s32.totalorder %s13, 4
      // Predicated region
      $region13: #{tpu_custom_call.1} parent=5 // pred_check
        %p81 = pneg %p80
      $region14: #{tpu_custom_call.1} parent=5 // pred_check_branch
        %83 = sbr.rel (%p81) target = $region16
      $region15: #{tpu_custom_call.1} parent=5 // pred_region
        // Predicated region
        $region17: #{tpu_custom_call.1} parent=15 // pred_check
          %p84 = pneg %p33
        $region18: #{tpu_custom_call.1} parent=15 // pred_check_branch
          %86 = sbr.rel (%p84) target = $region20
        $region19: #{tpu_custom_call.1} parent=15 // pred_region
          %s87 = sand.u32 %s23, 1
          %s88 = scalar_lea.sflag [#allocation3], %s87
          %s89 = sand.u32 %s23, 1
          %s90 = smul.addr %s89, 24
          %s91 = scalar_lea.vmem [#allocation2], %s90
          %93 = vsyncadd %s88, 0
          %s94 = smul.addr %s13, 8
          %s95 = scalar_lea.hbm %s0, %s94
          %s96 = sshll.u32 %s95, 4
          %s97 = int_to_ptr.hbm [resolvable:$true] %s96
          %s98 = sshll.u32 %s91, 4
          %s99 = int_to_ptr.vmem [resolvable:$true] %s98
          %104 = dma.hbm_to_vmem [thread:$0]  %s97, 384, %s99, %s88, 512, 128, 8
        $region20: #{tpu_custom_call.1} parent=15 // pred_fallthru
          _
      $region16: #{tpu_custom_call.1} parent=5 // pred_fallthru
        _
      %p105 = scmp.le.s32.totalorder 1, %s13
      %p106 = scmp.lt.s32.totalorder %s13, 5
      %p107 = pnand %p105, %p106
      %p108 = pneg %p107
      // Predicated region
      $region21: #{tpu_custom_call.1} parent=5 // pred_check
        _
      $region22: #{tpu_custom_call.1} parent=5 // pred_check_branch
        %110 = sbr.rel (%p107) target = $region24
      $region23: #{tpu_custom_call.1} parent=5 // pred_region
        %s111 = ssub.s32 %s13, 1
        %s112 = sand.u32 %s26, 1
        %s113 = scalar_lea.sflag [#allocation3], %s112
        %s114 = sand.u32 %s26, 1
        %s115 = smul.addr %s114, 24
        %s116 = scalar_lea.vmem [#allocation2], %s115
        // Predicated region
        $region25: #{tpu_custom_call.1} parent=23 // pred_check
          %p117 = pneg %p39
        $region26: #{tpu_custom_call.1} parent=23 // pred_check_branch
          %119 = sbr.rel (%p117) target = $region28
        $region27: #{tpu_custom_call.1} parent=23 // pred_region
          %121 = dma.done %s113, 384
        $region28: #{tpu_custom_call.1} parent=23 // pred_fallthru
          _
        %s122 = sand.u32 %s26, 1
        %s123 = scalar_lea.sflag [#allocation3], %s122
        %s124 = sand.u32 %s26, 1
        %s125 = smul.addr %s124, 24
        %s126 = scalar_lea.vmem [#allocation2], %s125
        %p127 = pneg %p39
        %p128 = pneg %p36
        %p129 = pneg %p65
        %p130 = pneg %p62
        %s131 = sand.u32 %s52, 1
        %s132 = scalar_lea.sflag [#allocation4], %s131
        %s133 = sand.u32 %s52, 1
        %s134 = scalar_lea.vmem [#allocation5], %s133
        %v135 = vld [vmem:[%s116] sm:$0xff]
        %s136 = scalar_lea.vmem %s116, 8 [#allocation2]
        %v137 = vld [vmem:[%s136] sm:$0xff]
        %s138 = scalar_lea.vmem %s116, 16 [#allocation2]
        %v139 = vld [vmem:[%s138] sm:$0xff]
        %v140 = vmul.f32 %v135, %v137
        %vm141 = vcmask 523264
        %v142 = vsel %vm141, %v140, 0.0
        %143 = vadd.xlane.f32.xlu0 %v142
        %v144 = vpop.xlane.xlu0 %143
        %v145 = vmul.f32 %v135, %v139
        %v146 = vsel %vm141, %v145, 0.0
        %147 = vadd.xlane.f32.xlu0 %v146
        %v148 = vpop.xlane.xlu0 %147
        %v149 = vmul.f32 %v135, %v135
        %v150 = vsel %vm141, %v149, 0.0
        %151 = vadd.xlane.f32.xlu0 %v150
        %v152 = vpop.xlane.xlu0 %151
        %v153 = vmul.f32 %v137, %v137
        %v154 = vsel %vm141, %v153, 0.0
        %155 = vadd.xlane.f32.xlu0 %v154
        %v156 = vpop.xlane.xlu0 %155
        %v157 = vmul.f32 %v139, %v139
        %v158 = vsel %vm141, %v157, 0.0
        %159 = vadd.xlane.f32.xlu0 %v158
        %v160 = vpop.xlane.xlu0 %159
        %v161 = vmul.f32 %v152, %v156
        %v162 = vmax.f32 %v161, 1e-16
        %v163 = vrsqrt.pop %v162
        %v164 = vmul.f32 %v163, %v162
        %v165 = vmul.f32 %v164, %v163
        %v166 = vmul.f32 0.5, %v165
        %v167 = vsub.f32 1.5, %v166
        %v168 = vmul.f32 %v163, %v167
        %vm169 = vweird.f32 %v162
        %vm170 = vweird.f32 %v163
        %vm171 = vmor %vm169, %vm170
        %v172 = vsel %vm171, %v163, %v168
        %v173 = vmul.f32 %v144, %v172
        %v174 = vmul.f32 %v152, %v160
        %v175 = vmax.f32 %v174, 1e-16
        %v176 = vrsqrt.pop %v175
        %v177 = vmul.f32 %v176, %v175
        %v178 = vmul.f32 %v177, %v176
        %v179 = vmul.f32 0.5, %v178
        %v180 = vsub.f32 1.5, %v179
        %v181 = vmul.f32 %v176, %v180
        %vm182 = vweird.f32 %v175
        %vm183 = vweird.f32 %v176
        %vm184 = vmor %vm182, %vm183
        %v185 = vsel %vm184, %v176, %v181
        %v186 = vmul.f32 %v148, %v185
        %v187 = vsub.f32 %v186, %v173
        %v188 = vmul.f32 %v187, 1.442695
        %v189 = vpow.pop %v188
        %v190 = vadd.f32 %v189, 1.0
        %v191 = vlog2.pop %v190
        %v192 = vmul.f32 %v191, 0.6931472
        %v193 = vmul.f32 -0.5, %v189
        %v194 = vadd.f32 %v193, 1.0
        %v195 = vmul.f32 %v194, %v189
        %v196 = vand.u32 2147483647, %v189
        %vm197 = vcmp.lt.f32.partialorder %v196, 0.0004427343
        %v198 = vsel %vm197, %v195, %v192
        %vm199 = vcmask 7168
        %v200 = vsel %vm199, %v198, 0.0
        %201 = vadd.xlane.f32.xlu0 %v200
        %v202 = vpop.xlane.xlu0 %201
        %v203 = vrot.slane %v202, 4
        %v204 = vadd.f32 %v202, %v203
        %v205 = vrot.slane %v204, 2
        %v206 = vadd.f32 %v204, %v205
        %v207 = vrot.slane %v206, 1
        %v208 = vadd.f32 %v206, %v207
        %s209 = vtos %v208
        %v210 = vstv %s209
        %211 = vst [vmem:[%s134] sm:$0x1] %v210
        %s212 = sand.u32 %s52, 1
        %s213 = scalar_lea.sflag [#allocation4], %s212
        %s214 = sand.u32 %s52, 1
        %s215 = scalar_lea.vmem [#allocation5], %s214
        // Predicated region
        $region29: #{tpu_custom_call.1} parent=23 // pred_check
          %p216 = pneg %p62
        $region30: #{tpu_custom_call.1} parent=23 // pred_check_branch
          %218 = sbr.rel (%p216) target = $region32
        $region31: #{tpu_custom_call.1} parent=23 // pred_region
          %220 = vsyncadd %s213, 0
          %s221 = scalar_lea.hbm %s1, %s18
          %s223 = sshll.u32 %s215, 4
          %s224 = int_to_ptr.vmem [resolvable:$true] %s223
          %s225 = sshll.u32 %s221, 4
          %s226 = int_to_ptr.hbm [resolvable:$true] %s225
          %228 = dma.vmem_to_hbm [thread:$0]  %s224, 16, %s226, %s213
        $region32: #{tpu_custom_call.1} parent=23 // pred_fallthru
          _
      $region24: #{tpu_custom_call.1} parent=5 // pred_fallthru
        _
      %p229 = scmp.le.s32.totalorder 2, %s13
      // Predicated region
      $region33: #{tpu_custom_call.1} parent=5 // pred_check
        %p230 = pneg %p229
      $region34: #{tpu_custom_call.1} parent=5 // pred_check_branch
        %232 = sbr.rel (%p230) target = $region36
      $region35: #{tpu_custom_call.1} parent=5 // pred_region
        %s233 = ssub.s32 %s13, 2
        // Predicated region
        $region37: #{tpu_custom_call.1} parent=35 // pred_check
          %p234 = pneg %p68
        $region38: #{tpu_custom_call.1} parent=35 // pred_check_branch
          %236 = sbr.rel (%p234) target = $region40
        $region39: #{tpu_custom_call.1} parent=35 // pred_region
          %s237 = sand.u32 %s53, 1
          %s238 = scalar_lea.sflag [#allocation4], %s237
          %s239 = sand.u32 %s53, 1
          %s240 = scalar_lea.vmem [#allocation5], %s239
          %242 = dma.done %s238, 16
        $region40: #{tpu_custom_call.1} parent=35 // pred_fallthru
          _
      $region36: #{tpu_custom_call.1} parent=5 // pred_fallthru
        _
    $region6: #{tpu_custom_call.1} parent=1 // loop_footer
      %s17 = sadd.s32 1, %s13
    $region7: #{tpu_custom_call.1} parent=1 // loop_footer_branch
      %12 = sbr.rel target = $region3
    $region8: #{tpu_custom_call.1} parent=1 // loop_exit
      _
    %243 = vsyncpa [#allocation3], 1
    %s244 = scalar_lea.sflag [#allocation3], 1
    %245 = vsyncpa %s244, 1
    %246 = vsyncpa [#allocation4], 1
    %s247 = scalar_lea.sflag [#allocation4], 1
    %248 = vsyncpa %s247, 1

</llo_original>
